<compile_context>
chip_gen: v5e
topology: v5e:2x2
jax: 0.10.0
libtpu: 0.0.40
codegen_flags: <defaults>
</compile_context>

<pallas_src>
import functools
import math

import jax
import jax.numpy as jnp
from jax.experimental import pallas as pl
from jax.experimental.pallas import tpu as pltpu

EPS = 1e-5


def layernorm_kernel(x_ref, gamma_ref, beta_ref, o_ref, *, eps):
    # x_ref: (rb, C) block resident in VMEM; reduce along lanes (last axis).
    x = x_ref[...]
    if x.dtype != jnp.float32:
        x = x.astype(jnp.float32)  # keep internal math in f32 (v5e has no bf16 VPU/EUP)

    inv_c = 1.0 / x.shape[-1]
    # Two independent lane reductions (no data dependence between them).
    s1 = jnp.sum(x, axis=-1, keepdims=True)
    s2 = jnp.sum(x * x, axis=-1, keepdims=True)
    mean = s1 * inv_c
    var = s2 * inv_c - mean * mean          # E[x^2] - mean^2
    inv = jax.lax.rsqrt(var + eps)          # EUP

    gamma = gamma_ref[...]                  # (1, C), already f32
    beta = beta_ref[...]                    # (1, C), already f32
    scale = inv * gamma                     # single (rb,1)x(1,C) broadcast
    y = (x - mean) * scale + beta
    o_ref[...] = y.astype(o_ref.dtype)


def prepare_ln_params(gamma, beta):
    """Cast/reshape affine params once (at load time), not per call."""
    C = gamma.shape[-1]
    return (gamma.astype(jnp.float32).reshape(1, C),
            beta.astype(jnp.float32).reshape(1, C))


def layernorm_pallas(x, gamma2, beta2, *, eps=EPS, row_block=512):
    """x: [..., C]; gamma2/beta2: pre-shaped f32 [1, C]. LayerNorm over last axis.

    row_block is a multiple of 16 (bf16 sublane packing) and sized so that
    double-buffered in+out blocks fit comfortably under v5e's 16 MiB scoped
    VMEM while giving v7x's two TCs multiple blocks each for large R.
    """
    orig_shape = x.shape
    C = orig_shape[-1]
    R = math.prod(orig_shape[:-1]) if len(orig_shape) > 1 else 1

    x2 = x.reshape(R, C)

    if R <= row_block:
        # Single block covering the full array: legal for any R (block equals
        # full array dims), no padding, no slicing, one launch.
        rb = R
        grid = (1,)
    else:
        # Grid over rows; last block may be partial (OOB reads garbage is fine
        # for per-row normalization, OOB writes are masked).
        rb = row_block
        grid = (pl.cdiv(R, rb),)

    out = pl.pallas_call(
        functools.partial(layernorm_kernel, eps=eps),
        out_shape=jax.ShapeDtypeStruct((R, C), x.dtype),
        grid=grid,
        in_specs=[
            pl.BlockSpec((rb, C), lambda i: (i, 0)),
            pl.BlockSpec((1, C), lambda i: (0, 0)),
            pl.BlockSpec((1, C), lambda i: (0, 0)),
        ],
        out_specs=pl.BlockSpec((rb, C), lambda i: (i, 0)),
        compiler_params=pltpu.CompilerParams(
            # No-op on single-TC v5e/v6e; shards the row axis on v7x megacore.
            dimension_semantics=("parallel",),
        ),
    )(x2, gamma2, beta2)

    return out.reshape(orig_shape)


if __name__ == "__main__":
    key = jax.random.PRNGKey(0)
    # Matches the module's forward: x333 of shape [1, 14, 14, 384]
    x = jax.random.normal(key, (1, 14, 14, 384), dtype=jnp.float32)

    C = 384
    # Deterministic affine parameters (PyTorch default init is ones / zeros;
    # perturb slightly so the affine path is exercised, still deterministic).
    gamma = jnp.ones((C,), dtype=jnp.float32) + 0.01 * jnp.arange(C, dtype=jnp.float32) / C
    beta = 0.02 * jnp.arange(C, dtype=jnp.float32) / C

    # Hoisted once (would be done at parameter-load time in a real model).
    gamma2, beta2 = prepare_ln_params(gamma, beta)

    y = layernorm_pallas(x, gamma2, beta2)
    jax.block_until_ready(y)

    # Reference check in plain JAX (two-pass mean/var, same as torch.nn.LayerNorm)
    mean = jnp.mean(x, axis=-1, keepdims=True)
    var = jnp.mean((x - mean) ** 2, axis=-1, keepdims=True)
    ref = (x - mean) / jnp.sqrt(var + EPS) * gamma + beta
    assert y.shape == (1, 14, 14, 384)
    assert jnp.max(jnp.abs(y - ref)) < 1e-4

    print("KERNEL_OK")
</pallas_src>

<mosaic_0001>
module attributes {stable_mosaic.version = 11 : i64} {
  func.func @layernorm_kernel(%arg0: i32, %arg1: memref<196x384xf32, #tpu.memory_space<vmem>>, %arg2: memref<1x384xf32, #tpu.memory_space<vmem>>, %arg3: memref<1x384xf32, #tpu.memory_space<vmem>>, %arg4: memref<196x384xf32, #tpu.memory_space<vmem>>) attributes {dimension_semantics = [#tpu.dimension_semantics<parallel>], iteration_bounds = array<i64: 1>, scalar_prefetch = 0 : i64, scratch_operands = 0 : i64, tpu.core_type = #tpu.core_type<tc>, window_params = [{transform_indices = @transform_0, window_bounds = array<i64: 196, 384>}, {pipeline_mode = #tpu.pipeline_mode<synchronous>, transform_indices = @transform_1, window_bounds = array<i64: 1, 384>}, {pipeline_mode = #tpu.pipeline_mode<synchronous>, transform_indices = @transform_2, window_bounds = array<i64: 1, 384>}, {transform_indices = @transform_3, window_bounds = array<i64: 196, 384>}]} {
    %c0 = arith.constant 0 : index
    %c0_0 = arith.constant 0 : index
    %0 = vector.load %arg1[%c0, %c0_0] : memref<196x384xf32, #tpu.memory_space<vmem>>, vector<196x384xf32>
    %cst = arith.constant dense<0.000000e+00> : vector<196xf32>
    %1 = vector.multi_reduction <add>, %0, %cst [1] : vector<196x384xf32> to vector<196xf32>
    %2 = vector.shape_cast %1 : vector<196xf32> to vector<196x1xf32>
    %3 = arith.mulf %0, %0 : vector<196x384xf32>
    %cst_1 = arith.constant dense<0.000000e+00> : vector<196xf32>
    %4 = vector.multi_reduction <add>, %3, %cst_1 [1] : vector<196x384xf32> to vector<196xf32>
    %5 = vector.shape_cast %4 : vector<196xf32> to vector<196x1xf32>
    %cst_2 = arith.constant 0.00260416674 : f32
    %6 = vector.broadcast %cst_2 : f32 to vector<196x1xf32>
    %7 = arith.mulf %2, %6 : vector<196x1xf32>
    %cst_3 = arith.constant 0.00260416674 : f32
    %8 = vector.broadcast %cst_3 : f32 to vector<196x1xf32>
    %9 = arith.mulf %5, %8 : vector<196x1xf32>
    %10 = arith.mulf %7, %7 : vector<196x1xf32>
    %11 = arith.subf %9, %10 : vector<196x1xf32>
    %cst_4 = arith.constant 9.99999974E-6 : f32
    %12 = vector.broadcast %cst_4 : f32 to vector<196x1xf32>
    %13 = arith.addf %11, %12 : vector<196x1xf32>
    %14 = math.rsqrt %13 : vector<196x1xf32>
    %c0_5 = arith.constant 0 : index
    %c0_6 = arith.constant 0 : index
    %15 = vector.load %arg2[%c0_5, %c0_6] : memref<1x384xf32, #tpu.memory_space<vmem>>, vector<1x384xf32>
    %c0_7 = arith.constant 0 : index
    %c0_8 = arith.constant 0 : index
    %16 = vector.load %arg3[%c0_7, %c0_8] : memref<1x384xf32, #tpu.memory_space<vmem>>, vector<1x384xf32>
    %17 = vector.broadcast %14 : vector<196x1xf32> to vector<196x384xf32>
    %18 = vector.broadcast %15 : vector<1x384xf32> to vector<196x384xf32>
    %19 = arith.mulf %17, %18 : vector<196x384xf32>
    %20 = vector.broadcast %7 : vector<196x1xf32> to vector<196x384xf32>
    %21 = arith.subf %0, %20 : vector<196x384xf32>
    %22 = arith.mulf %21, %19 : vector<196x384xf32>
    %23 = vector.broadcast %16 : vector<1x384xf32> to vector<196x384xf32>
    %24 = arith.addf %22, %23 : vector<196x384xf32>
    %c0_9 = arith.constant 0 : index
    %c0_10 = arith.constant 0 : index
    %25 = vector.load %arg4[%c0_9, %c0_10] : memref<196x384xf32, #tpu.memory_space<vmem>>, vector<196x384xf32>
    tpu.vector_store %arg4[%c0_9, %c0_10], %24 {strides = array<i32>} : memref<196x384xf32, #tpu.memory_space<vmem>>, vector<196x384xf32>,
    return
  }
  func.func @transform_0(%arg0: i32) -> (i32, i32) {
    %c0_i32 = arith.constant 0 : i32
    %c0_i32_0 = arith.constant 0 : i32
    return %arg0, %c0_i32 : i32, i32
  }
  func.func @transform_1(%arg0: i32) -> (i32, i32) {
    %c0_i32 = arith.constant 0 : i32
    %c0_i32_0 = arith.constant 0 : i32
    %c0_i32_1 = arith.constant 0 : i32
    return %c0_i32, %c0_i32_0 : i32, i32
  }
  func.func @transform_2(%arg0: i32) -> (i32, i32) {
    %c0_i32 = arith.constant 0 : i32
    %c0_i32_0 = arith.constant 0 : i32
    %c0_i32_1 = arith.constant 0 : i32
    return %c0_i32, %c0_i32_0 : i32, i32
  }
  func.func @transform_3(%arg0: i32) -> (i32, i32) {
    %c0_i32 = arith.constant 0 : i32
    %c0_i32_0 = arith.constant 0 : i32
    return %arg0, %c0_i32 : i32, i32
  }
}

</mosaic_0001>

<llo_original>
// kernel: tpu_custom_call.1
$region0: #{tpu_custom_call.1}
  #allocation0 [shape = 'u32[]', space=smem, size = 0x4, offset = 0x4, fixed_abs, tag = 'smem constant byte address 0x4 - core index']
  #allocation1 [shape = 'u32[72,128]{1,0:T(1,128)}', space=vmem, size = 0x9000, scoped, tag = 'internal scratch']
  %s0 = inlined_call_operand.hbm [shape: f32[196,384], index: 0, kind: input, shape index: {}]
  %s1 = inlined_call_operand.hbm [shape: f32[1,384], index: 1, kind: input, shape index: {}]
  %s2 = inlined_call_operand.hbm [shape: f32[1,384], index: 2, kind: input, shape index: {}]
  %s3 = inlined_call_operand.hbm [shape: f32[196,384], index: 3, kind: output, shape index: {}]
  %s4 = sld [smem:[#allocation0]]
  $region34: #{tpu_custom_call.1} parent=0
    _
  %s6 = ssub.s32 1, %s4
  %s7 = scalar_select 0, %s6, %s4
  $region1: #{tpu_custom_call.1} parent=0
    #allocation2 [shape = 'u8[307200]{0}', space=vmem, size = 0x4b000, scoped, tag = 'input window, operand 0, single buffered']
    #allocation3 [shape = 's32[1]{0}', space=sflag, size = 0x4, scoped, tag = 'scoped memory for tpu_custom_call.1']
    #allocation4 [shape = 's32[1]{0}', space=sflag, size = 0x4, scoped, tag = 'scoped memory for tpu_custom_call.1']
    #allocation5 [shape = 'u8[1536]{0}', space=vmem, size = 0x800, scoped, tag = 'input window, operand 1, single buffered']
    #allocation6 [shape = 's32[1]{0}', space=sflag, size = 0x4, scoped, tag = 'scoped memory for tpu_custom_call.1']
    #allocation7 [shape = 'u8[1536]{0}', space=vmem, size = 0x800, scoped, tag = 'input window, operand 2, single buffered']
    #allocation8 [shape = 'u8[307200]{0}', space=vmem, size = 0x4b000, scoped, tag = 'output window, operand 0, single buffered']
    %8 = vsyncpa [#allocation3], 0
    %9 = vsyncpa [#allocation6], 0
    %10 = vsyncpa [#allocation4], 0
    // Predicated region
    $region2: #{tpu_custom_call.1} parent=1 // pred_check
      _
    $region3: #{tpu_custom_call.1} parent=1 // pred_check_branch
      %12 = sbr.rel (0) target = $region5
    $region4: #{tpu_custom_call.1} parent=1 // pred_region
      %14 = vsyncadd [#allocation3], 0
      %s15 = sshll.u32 %s0, 4
      %s16 = int_to_ptr.hbm [resolvable:$true] %s15
      %s17 = sshll.u32 [#allocation2], 4
      %s18 = int_to_ptr.vmem [resolvable:$true] %s17
      %23 = dma.hbm_to_vmem [thread:$0]  %s16, 9600, %s18, [#allocation3], 384, 384, 24
    $region5: #{tpu_custom_call.1} parent=1 // pred_fallthru
      _
    // Predicated region
    $region6: #{tpu_custom_call.1} parent=1 // pred_check
      _
    $region7: #{tpu_custom_call.1} parent=1 // pred_check_branch
      %25 = sbr.rel (0) target = $region9
    $region8: #{tpu_custom_call.1} parent=1 // pred_region
      %27 = vsyncadd [#allocation6], 0
      %s29 = sshll.u32 %s1, 4
      %s30 = int_to_ptr.hbm [resolvable:$true] %s29
      %s31 = sshll.u32 [#allocation5], 4
      %s32 = int_to_ptr.vmem [resolvable:$true] %s31
      %34 = dma.hbm_to_vmem [thread:$0]  %s30, 48, %s32, [#allocation6]
    $region9: #{tpu_custom_call.1} parent=1 // pred_fallthru
      _
    // Predicated region
    $region10: #{tpu_custom_call.1} parent=1 // pred_check
      _
    $region11: #{tpu_custom_call.1} parent=1 // pred_check_branch
      %36 = sbr.rel (0) target = $region13
    $region12: #{tpu_custom_call.1} parent=1 // pred_region
      %38 = vsyncadd [#allocation6], 0
      %s40 = sshll.u32 %s2, 4
      %s41 = int_to_ptr.hbm [resolvable:$true] %s40
      %s42 = sshll.u32 [#allocation7], 4
      %s43 = int_to_ptr.vmem [resolvable:$true] %s42
      %45 = dma.hbm_to_vmem [thread:$0]  %s41, 48, %s43, [#allocation6]
    $region13: #{tpu_custom_call.1} parent=1 // pred_fallthru
      _
    // Predicated region
    $region14: #{tpu_custom_call.1} parent=1 // pred_check
      _
    $region15: #{tpu_custom_call.1} parent=1 // pred_check_branch
      %47 = sbr.rel (0) target = $region17
    $region16: #{tpu_custom_call.1} parent=1 // pred_region
      %49 = dma.done [#allocation3], 9600
    $region17: #{tpu_custom_call.1} parent=1 // pred_fallthru
      _
    // Predicated region
    $region18: #{tpu_custom_call.1} parent=1 // pred_check
      _
    $region19: #{tpu_custom_call.1} parent=1 // pred_check_branch
      %51 = sbr.rel (0) target = $region21
    $region20: #{tpu_custom_call.1} parent=1 // pred_region
      %53 = dma.done [#allocation6], 48
    $region21: #{tpu_custom_call.1} parent=1 // pred_fallthru
      _
    // Predicated region
    $region22: #{tpu_custom_call.1} parent=1 // pred_check
      _
    $region23: #{tpu_custom_call.1} parent=1 // pred_check_branch
      %55 = sbr.rel (0) target = $region25
    $region24: #{tpu_custom_call.1} parent=1 // pred_region
      %57 = dma.done [#allocation6], 48
    $region25: #{tpu_custom_call.1} parent=1 // pred_fallthru
      _
    %v58 = vld [vmem:[#allocation2] sm:$0xff]
    %v59 = vld [vmem:[#allocation2 + $0x8] sm:$0xff]
    %v60 = vld [vmem:[#allocation2 + $0x10] sm:$0xff]
    %v61 = vld [vmem:[#allocation2 + $0x18] sm:$0xff]
    %v62 = vld [vmem:[#allocation2 + $0x20] sm:$0xff]
    %v63 = vld [vmem:[#allocation2 + $0x28] sm:$0xff]
    %v64 = vld [vmem:[#allocation2 + $0x30] sm:$0xff]
    %v65 = vld [vmem:[#allocation2 + $0x38] sm:$0xff]
    %v66 = vld [vmem:[#allocation2 + $0x40] sm:$0xff]
    %v67 = vld [vmem:[#allocation2 + $0x48] sm:$0xff]
    %v68 = vld [vmem:[#allocation2 + $0x50] sm:$0xff]
    %v69 = vld [vmem:[#allocation2 + $0x58] sm:$0xff]
    %v70 = vld [vmem:[#allocation2 + $0x60] sm:$0xff]
    %v71 = vld [vmem:[#allocation2 + $0x68] sm:$0xff]
    %v72 = vld [vmem:[#allocation2 + $0x70] sm:$0xff]
    %v73 = vld [vmem:[#allocation2 + $0x78] sm:$0xff]
    %v74 = vld [vmem:[#allocation2 + $0x80] sm:$0xff]
    %v75 = vld [vmem:[#allocation2 + $0x88] sm:$0xff]
    %v76 = vld [vmem:[#allocation2 + $0x90] sm:$0xff]
    %v77 = vld [vmem:[#allocation2 + $0x98] sm:$0xff]
    %v78 = vld [vmem:[#allocation2 + $0xa0] sm:$0xff]
    %v79 = vld [vmem:[#allocation2 + $0xa8] sm:$0xff]
    %v80 = vld [vmem:[#allocation2 + $0xb0] sm:$0xff]
    %v81 = vld [vmem:[#allocation2 + $0xb8] sm:$0xff]
    %v82 = vld [vmem:[#allocation2 + $0xc0] sm:$0xff]
    %v83 = vld [vmem:[#allocation2 + $0xc8] sm:$0xff]
    %v84 = vld [vmem:[#allocation2 + $0xd0] sm:$0xff]
    %v85 = vld [vmem:[#allocation2 + $0xd8] sm:$0xff]
    %v86 = vld [vmem:[#allocation2 + $0xe0] sm:$0xff]
    %v87 = vld [vmem:[#allocation2 + $0xe8] sm:$0xff]
    %v88 = vld [vmem:[#allocation2 + $0xf0] sm:$0xff]
    %v89 = vld [vmem:[#allocation2 + $0xf8] sm:$0xff]
    %v90 = vld [vmem:[#allocation2 + $0x100] sm:$0xff]
    %v91 = vld [vmem:[#allocation2 + $0x108] sm:$0xff]
    %v92 = vld [vmem:[#allocation2 + $0x110] sm:$0xff]
    %v93 = vld [vmem:[#allocation2 + $0x118] sm:$0xff]
    %v94 = vld [vmem:[#allocation2 + $0x120] sm:$0xff]
    %v95 = vld [vmem:[#allocation2 + $0x128] sm:$0xff]
    %v96 = vld [vmem:[#allocation2 + $0x130] sm:$0xff]
    %v97 = vld [vmem:[#allocation2 + $0x138] sm:$0xff]
    %v98 = vld [vmem:[#allocation2 + $0x140] sm:$0xff]
    %v99 = vld [vmem:[#allocation2 + $0x148] sm:$0xff]
    %v100 = vld [vmem:[#allocation2 + $0x150] sm:$0xff]
    %v101 = vld [vmem:[#allocation2 + $0x158] sm:$0xff]
    %v102 = vld [vmem:[#allocation2 + $0x160] sm:$0xff]
    %v103 = vld [vmem:[#allocation2 + $0x168] sm:$0xff]
    %v104 = vld [vmem:[#allocation2 + $0x170] sm:$0xff]
    %v105 = vld [vmem:[#allocation2 + $0x178] sm:$0xff]
    %v106 = vld [vmem:[#allocation2 + $0x180] sm:$0xff]
    %v107 = vld [vmem:[#allocation2 + $0x188] sm:$0xff]
    %v108 = vld [vmem:[#allocation2 + $0x190] sm:$0xff]
    %v109 = vld [vmem:[#allocation2 + $0x198] sm:$0xff]
    %v110 = vld [vmem:[#allocation2 + $0x1a0] sm:$0xff]
    %v111 = vld [vmem:[#allocation2 + $0x1a8] sm:$0xff]
    %v112 = vld [vmem:[#allocation2 + $0x1b0] sm:$0xff]
    %v113 = vld [vmem:[#allocation2 + $0x1b8] sm:$0xff]
    %v114 = vld [vmem:[#allocation2 + $0x1c0] sm:$0xff]
    %v115 = vld [vmem:[#allocation2 + $0x1c8] sm:$0xff]
    %v116 = vld [vmem:[#allocation2 + $0x1d0] sm:$0xff]
    %v117 = vld [vmem:[#allocation2 + $0x1d8] sm:$0xff]
    %v118 = vld [vmem:[#allocation2 + $0x1e0] sm:$0xff]
    %v119 = vld [vmem:[#allocation2 + $0x1e8] sm:$0xff]
    %v120 = vld [vmem:[#allocation2 + $0x1f0] sm:$0xff]
    %v121 = vld [vmem:[#allocation2 + $0x1f8] sm:$0xff]
    %v122 = vld [vmem:[#allocation2 + $0x200] sm:$0xff]
    %v123 = vld [vmem:[#allocation2 + $0x208] sm:$0xff]
    %v124 = vld [vmem:[#allocation2 + $0x210] sm:$0xff]
    %v125 = vld [vmem:[#allocation2 + $0x218] sm:$0xff]
    %v126 = vld [vmem:[#allocation2 + $0x220] sm:$0xff]
    %v127 = vld [vmem:[#allocation2 + $0x228] sm:$0xff]
    %v128 = vld [vmem:[#allocation2 + $0x230] sm:$0xff]
    %v129 = vld [vmem:[#allocation2 + $0x238] sm:$0xff]
    %v130 = vld [vmem:[#allocation2 + $0x240] sm:$0xf]
    %v131 = vld [vmem:[#allocation2 + $0x248] sm:$0xf]
    %v132 = vld [vmem:[#allocation2 + $0x250] sm:$0xf]
    %v133 = vadd.f32 %v58, %v59
    %v134 = vadd.f32 %v133, %v60
    %135 = vadd.xlane.f32.xlu0 %v134
    %v136 = vpop.xlane.xlu0 %135
    %v137 = vadd.f32 %v61, %v62
    %v138 = vadd.f32 %v137, %v63
    %139 = vadd.xlane.f32.xlu0 %v138
    %v140 = vpop.xlane.xlu0 %139
    %v141 = vadd.f32 %v64, %v65
    %v142 = vadd.f32 %v141, %v66
    %143 = vadd.xlane.f32.xlu0 %v142
    %v144 = vpop.xlane.xlu0 %143
    %v145 = vadd.f32 %v67, %v68
    %v146 = vadd.f32 %v145, %v69
    %147 = vadd.xlane.f32.xlu0 %v146
    %v148 = vpop.xlane.xlu0 %147
    %v149 = vadd.f32 %v70, %v71
    %v150 = vadd.f32 %v149, %v72
    %151 = vadd.xlane.f32.xlu0 %v150
    %v152 = vpop.xlane.xlu0 %151
    %v153 = vadd.f32 %v73, %v74
    %v154 = vadd.f32 %v153, %v75
    %155 = vadd.xlane.f32.xlu0 %v154
    %v156 = vpop.xlane.xlu0 %155
    %v157 = vadd.f32 %v76, %v77
    %v158 = vadd.f32 %v157, %v78
    %159 = vadd.xlane.f32.xlu0 %v158
    %v160 = vpop.xlane.xlu0 %159
    %v161 = vadd.f32 %v79, %v80
    %v162 = vadd.f32 %v161, %v81
    %163 = vadd.xlane.f32.xlu0 %v162
    %v164 = vpop.xlane.xlu0 %163
    %v165 = vadd.f32 %v82, %v83
    %v166 = vadd.f32 %v165, %v84
    %167 = vadd.xlane.f32.xlu0 %v166
    %v168 = vpop.xlane.xlu0 %167
    %v169 = vadd.f32 %v85, %v86
    %v170 = vadd.f32 %v169, %v87
    %171 = vadd.xlane.f32.xlu0 %v170
    %v172 = vpop.xlane.xlu0 %171
    %v173 = vadd.f32 %v88, %v89
    %v174 = vadd.f32 %v173, %v90
    %175 = vadd.xlane.f32.xlu0 %v174
    %v176 = vpop.xlane.xlu0 %175
    %v177 = vadd.f32 %v91, %v92
    %v178 = vadd.f32 %v177, %v93
    %179 = vadd.xlane.f32.xlu0 %v178
    %v180 = vpop.xlane.xlu0 %179
    %v181 = vadd.f32 %v94, %v95
    %v182 = vadd.f32 %v181, %v96
    %183 = vadd.xlane.f32.xlu0 %v182
    %v184 = vpop.xlane.xlu0 %183
    %v185 = vadd.f32 %v97, %v98
    %v186 = vadd.f32 %v185, %v99
    %187 = vadd.xlane.f32.xlu0 %v186
    %v188 = vpop.xlane.xlu0 %187
    %v189 = vadd.f32 %v100, %v101
    %v190 = vadd.f32 %v189, %v102
    %191 = vadd.xlane.f32.xlu0 %v190
    %v192 = vpop.xlane.xlu0 %191
    %v193 = vadd.f32 %v103, %v104
    %v194 = vadd.f32 %v193, %v105
    %195 = vadd.xlane.f32.xlu0 %v194
    %v196 = vpop.xlane.xlu0 %195
    %v197 = vadd.f32 %v106, %v107
    %v198 = vadd.f32 %v197, %v108
    %199 = vadd.xlane.f32.xlu0 %v198
    %v200 = vpop.xlane.xlu0 %199
    %v201 = vadd.f32 %v109, %v110
    %v202 = vadd.f32 %v201, %v111
    %203 = vadd.xlane.f32.xlu0 %v202
    %v204 = vpop.xlane.xlu0 %203
    %v205 = vadd.f32 %v112, %v113
    %v206 = vadd.f32 %v205, %v114
    %207 = vadd.xlane.f32.xlu0 %v206
    %v208 = vpop.xlane.xlu0 %207
    %v209 = vadd.f32 %v115, %v116
    %v210 = vadd.f32 %v209, %v117
    %211 = vadd.xlane.f32.xlu0 %v210
    %v212 = vpop.xlane.xlu0 %211
    %v213 = vadd.f32 %v118, %v119
    %v214 = vadd.f32 %v213, %v120
    %215 = vadd.xlane.f32.xlu0 %v214
    %v216 = vpop.xlane.xlu0 %215
    %v217 = vadd.f32 %v121, %v122
    %v218 = vadd.f32 %v217, %v123
    %219 = vadd.xlane.f32.xlu0 %v218
    %v220 = vpop.xlane.xlu0 %219
    %v221 = vadd.f32 %v124, %v125
    %v222 = vadd.f32 %v221, %v126
    %223 = vadd.xlane.f32.xlu0 %v222
    %v224 = vpop.xlane.xlu0 %223
    %v225 = vadd.f32 %v127, %v128
    %v226 = vadd.f32 %v225, %v129
    %227 = vadd.xlane.f32.xlu0 %v226
    %v228 = vpop.xlane.xlu0 %227
    %vm229 = vcmask 1043456
    %v230 = vsel %vm229, %v130, 0.0
    %v231 = vsel %vm229, %v131, 0.0
    %v232 = vadd.f32 %v230, %v231
    %v233 = vsel %vm229, %v132, 0.0
    %v234 = vadd.f32 %v232, %v233
    %235 = vadd.xlane.f32.xlu0 %v234
    %v236 = vpop.xlane.xlu0 %235
    %v237 = vmul.f32 %v58, %v58
    %v238 = vmul.f32 %v59, %v59
    %v239 = vmul.f32 %v60, %v60
    %v240 = vmul.f32 %v61, %v61
    %v241 = vmul.f32 %v62, %v62
    %v242 = vmul.f32 %v63, %v63
    %v243 = vmul.f32 %v64, %v64
    %v244 = vmul.f32 %v65, %v65
    %v245 = vmul.f32 %v66, %v66
    %v246 = vmul.f32 %v67, %v67
    %v247 = vmul.f32 %v68, %v68
    %v248 = vmul.f32 %v69, %v69
    %v249 = vmul.f32 %v70, %v70
    %v250 = vmul.f32 %v71, %v71
    %v251 = vmul.f32 %v72, %v72
    %v252 = vmul.f32 %v73, %v73
    %v253 = vmul.f32 %v74, %v74
    %v254 = vmul.f32 %v75, %v75
    %v255 = vmul.f32 %v76, %v76
    %v256 = vmul.f32 %v77, %v77
    %v257 = vmul.f32 %v78, %v78
    %v258 = vmul.f32 %v79, %v79
    %v259 = vmul.f32 %v80, %v80
    %v260 = vmul.f32 %v81, %v81
    %v261 = vmul.f32 %v82, %v82
    %v262 = vmul.f32 %v83, %v83
    %v263 = vmul.f32 %v84, %v84
    %v264 = vmul.f32 %v85, %v85
    %v265 = vmul.f32 %v86, %v86
    %v266 = vmul.f32 %v87, %v87
    %v267 = vmul.f32 %v88, %v88
    %v268 = vmul.f32 %v89, %v89
    %v269 = vmul.f32 %v90, %v90
    %v270 = vmul.f32 %v91, %v91
    %v271 = vmul.f32 %v92, %v92
    %v272 = vmul.f32 %v93, %v93
    %v273 = vmul.f32 %v94, %v94
    %v274 = vmul.f32 %v95, %v95
    %v275 = vmul.f32 %v96, %v96
    %v276 = vmul.f32 %v97, %v97
    %v277 = vmul.f32 %v98, %v98
    %v278 = vmul.f32 %v99, %v99
    %v279 = vmul.f32 %v100, %v100
    %v280 = vmul.f32 %v101, %v101
    %v281 = vmul.f32 %v102, %v102
    %v282 = vmul.f32 %v103, %v103
    %v283 = vmul.f32 %v104, %v104
    %v284 = vmul.f32 %v105, %v105
    %v285 = vmul.f32 %v106, %v106
    %v286 = vmul.f32 %v107, %v107
    %v287 = vmul.f32 %v108, %v108
    %v288 = vmul.f32 %v109, %v109
    %v289 = vmul.f32 %v110, %v110
    %v290 = vmul.f32 %v111, %v111
    %v291 = vmul.f32 %v112, %v112
    %v292 = vmul.f32 %v113, %v113
    %v293 = vmul.f32 %v114, %v114
    %v294 = vmul.f32 %v115, %v115
    %v295 = vmul.f32 %v116, %v116
    %v296 = vmul.f32 %v117, %v117
    %v297 = vmul.f32 %v118, %v118
    %v298 = vmul.f32 %v119, %v119
    %v299 = vmul.f32 %v120, %v120
    %v300 = vmul.f32 %v121, %v121
    %v301 = vmul.f32 %v122, %v122
    %v302 = vmul.f32 %v123, %v123
    %v303 = vmul.f32 %v124, %v124
    %v304 = vmul.f32 %v125, %v125
    %v305 = vmul.f32 %v126, %v126
    %v306 = vmul.f32 %v127, %v127
    %v307 = vmul.f32 %v128, %v128
    %v308 = vmul.f32 %v129, %v129
    %v309 = vmul.f32 %v130, %v130
    %v310 = vmul.f32 %v131, %v131
    %v311 = vmul.f32 %v132, %v132
    %v312 = vadd.f32 %v237, %v238
    %v313 = vadd.f32 %v312, %v239
    %314 = vadd.xlane.f32.xlu0 %v313
    %v315 = vpop.xlane.xlu0 %314
    %v316 = vadd.f32 %v240, %v241
    %v317 = vadd.f32 %v316, %v242
    %318 = vadd.xlane.f32.xlu0 %v317
    %v319 = vpop.xlane.xlu0 %318
    %v320 = vadd.f32 %v243, %v244
    %v321 = vadd.f32 %v320, %v245
    %322 = vadd.xlane.f32.xlu0 %v321
    %v323 = vpop.xlane.xlu0 %322
    %v324 = vadd.f32 %v246, %v247
    %v325 = vadd.f32 %v324, %v248
    %326 = vadd.xlane.f32.xlu0 %v325
    %v327 = vpop.xlane.xlu0 %326
    %v328 = vadd.f32 %v249, %v250
    %v329 = vadd.f32 %v328, %v251
    %330 = vadd.xlane.f32.xlu0 %v329
    %v331 = vpop.xlane.xlu0 %330
    %v332 = vadd.f32 %v252, %v253
    %v333 = vadd.f32 %v332, %v254
    %334 = vadd.xlane.f32.xlu0 %v333
    %v335 = vpop.xlane.xlu0 %334
    %v336 = vadd.f32 %v255, %v256
    %v337 = vadd.f32 %v336, %v257
    %338 = vadd.xlane.f32.xlu0 %v337
    %v339 = vpop.xlane.xlu0 %338
    %v340 = vadd.f32 %v258, %v259
    %v341 = vadd.f32 %v340, %v260
    %342 = vadd.xlane.f32.xlu0 %v341
    %v343 = vpop.xlane.xlu0 %342
    %v344 = vadd.f32 %v261, %v262
    %v345 = vadd.f32 %v344, %v263
    %346 = vadd.xlane.f32.xlu0 %v345
    %v347 = vpop.xlane.xlu0 %346
    %v348 = vadd.f32 %v264, %v265
    %v349 = vadd.f32 %v348, %v266
    %350 = vadd.xlane.f32.xlu0 %v349
    %v351 = vpop.xlane.xlu0 %350
    %v352 = vadd.f32 %v267, %v268
    %v353 = vadd.f32 %v352, %v269
    %354 = vadd.xlane.f32.xlu0 %v353
    %v355 = vpop.xlane.xlu0 %354
    %v356 = vadd.f32 %v270, %v271
    %v357 = vadd.f32 %v356, %v272
    %358 = vadd.xlane.f32.xlu0 %v357
    %v359 = vpop.xlane.xlu0 %358
    %v360 = vadd.f32 %v273, %v274
    %v361 = vadd.f32 %v360, %v275
    %362 = vadd.xlane.f32.xlu0 %v361
    %v363 = vpop.xlane.xlu0 %362
    %v364 = vadd.f32 %v276, %v277
    %v365 = vadd.f32 %v364, %v278
    %366 = vadd.xlane.f32.xlu0 %v365
    %v367 = vpop.xlane.xlu0 %366
    %v368 = vadd.f32 %v279, %v280
    %v369 = vadd.f32 %v368, %v281
    %370 = vadd.xlane.f32.xlu0 %v369
    %v371 = vpop.xlane.xlu0 %370
    %v372 = vadd.f32 %v282, %v283
    %v373 = vadd.f32 %v372, %v284
    %374 = vadd.xlane.f32.xlu0 %v373
    %v375 = vpop.xlane.xlu0 %374
    %v376 = vadd.f32 %v285, %v286
    %v377 = vadd.f32 %v376, %v287
    %378 = vadd.xlane.f32.xlu0 %v377
    %v379 = vpop.xlane.xlu0 %378
    %v380 = vadd.f32 %v288, %v289
    %v381 = vadd.f32 %v380, %v290
    %382 = vadd.xlane.f32.xlu0 %v381
    %v383 = vpop.xlane.xlu0 %382
    %v384 = vadd.f32 %v291, %v292
    %v385 = vadd.f32 %v384, %v293
    %386 = vadd.xlane.f32.xlu0 %v385
    %v387 = vpop.xlane.xlu0 %386
    %v388 = vadd.f32 %v294, %v295
    %v389 = vadd.f32 %v388, %v296
    %390 = vadd.xlane.f32.xlu0 %v389
    %v391 = vpop.xlane.xlu0 %390
    %v392 = vadd.f32 %v297, %v298
    %v393 = vadd.f32 %v392, %v299
    %394 = vadd.xlane.f32.xlu0 %v393
    %v395 = vpop.xlane.xlu0 %394
    %v396 = vadd.f32 %v300, %v301
    %v397 = vadd.f32 %v396, %v302
    %398 = vadd.xlane.f32.xlu0 %v397
    %v399 = vpop.xlane.xlu0 %398
    %v400 = vadd.f32 %v303, %v304
    %v401 = vadd.f32 %v400, %v305
    %402 = vadd.xlane.f32.xlu0 %v401
    %v403 = vpop.xlane.xlu0 %402
    %v404 = vadd.f32 %v306, %v307
    %v405 = vadd.f32 %v404, %v308
    %406 = vadd.xlane.f32.xlu0 %v405
    %v407 = vpop.xlane.xlu0 %406
    %v408 = vsel %vm229, %v309, 0.0
    %v409 = vsel %vm229, %v310, 0.0
    %v410 = vadd.f32 %v408, %v409
    %v411 = vsel %vm229, %v311, 0.0
    %v412 = vadd.f32 %v410, %v411
    %413 = vadd.xlane.f32.xlu0 %v412
    %v414 = vpop.xlane.xlu0 %413
    %v415 = vmul.f32 %v136, 0.0026041667
    %v416 = vmul.f32 %v140, 0.0026041667
    %v417 = vmul.f32 %v144, 0.0026041667
    %v418 = vmul.f32 %v148, 0.0026041667
    %v419 = vmul.f32 %v152, 0.0026041667
    %v420 = vmul.f32 %v156, 0.0026041667
    %v421 = vmul.f32 %v160, 0.0026041667
    %v422 = vmul.f32 %v164, 0.0026041667
    %v423 = vmul.f32 %v168, 0.0026041667
    %v424 = vmul.f32 %v172, 0.0026041667
    %v425 = vmul.f32 %v176, 0.0026041667
    %v426 = vmul.f32 %v180, 0.0026041667
    %v427 = vmul.f32 %v184, 0.0026041667
    %v428 = vmul.f32 %v188, 0.0026041667
    %v429 = vmul.f32 %v192, 0.0026041667
    %v430 = vmul.f32 %v196, 0.0026041667
    %v431 = vmul.f32 %v200, 0.0026041667
    %v432 = vmul.f32 %v204, 0.0026041667
    %v433 = vmul.f32 %v208, 0.0026041667
    %v434 = vmul.f32 %v212, 0.0026041667
    %v435 = vmul.f32 %v216, 0.0026041667
    %v436 = vmul.f32 %v220, 0.0026041667
    %v437 = vmul.f32 %v224, 0.0026041667
    %v438 = vmul.f32 %v228, 0.0026041667
    %v439 = vmul.f32 %v236, 0.0026041667
    %v440 = vmul.f32 %v315, 0.0026041667
    %v441 = vmul.f32 %v319, 0.0026041667
    %v442 = vmul.f32 %v323, 0.0026041667
    %v443 = vmul.f32 %v327, 0.0026041667
    %v444 = vmul.f32 %v331, 0.0026041667
    %v445 = vmul.f32 %v335, 0.0026041667
    %v446 = vmul.f32 %v339, 0.0026041667
    %v447 = vmul.f32 %v343, 0.0026041667
    %v448 = vmul.f32 %v347, 0.0026041667
    %v449 = vmul.f32 %v351, 0.0026041667
    %v450 = vmul.f32 %v355, 0.0026041667
    %v451 = vmul.f32 %v359, 0.0026041667
    %v452 = vmul.f32 %v363, 0.0026041667
    %v453 = vmul.f32 %v367, 0.0026041667
    %v454 = vmul.f32 %v371, 0.0026041667
    %v455 = vmul.f32 %v375, 0.0026041667
    %v456 = vmul.f32 %v379, 0.0026041667
    %v457 = vmul.f32 %v383, 0.0026041667
    %v458 = vmul.f32 %v387, 0.0026041667
    %v459 = vmul.f32 %v391, 0.0026041667
    %v460 = vmul.f32 %v395, 0.0026041667
    %v461 = vmul.f32 %v399, 0.0026041667
    %v462 = vmul.f32 %v403, 0.0026041667
    %v463 = vmul.f32 %v407, 0.0026041667
    %v464 = vmul.f32 %v414, 0.0026041667
    %v465 = vmul.f32 %v415, %v415
    %v466 = vmul.f32 %v416, %v416
    %v467 = vmul.f32 %v417, %v417
    %v468 = vmul.f32 %v418, %v418
    %v469 = vmul.f32 %v419, %v419
    %v470 = vmul.f32 %v420, %v420
    %v471 = vmul.f32 %v421, %v421
    %v472 = vmul.f32 %v422, %v422
    %v473 = vmul.f32 %v423, %v423
    %v474 = vmul.f32 %v424, %v424
    %v475 = vmul.f32 %v425, %v425
    %v476 = vmul.f32 %v426, %v426
    %v477 = vmul.f32 %v427, %v427
    %v478 = vmul.f32 %v428, %v428
    %v479 = vmul.f32 %v429, %v429
    %v480 = vmul.f32 %v430, %v430
    %v481 = vmul.f32 %v431, %v431
    %v482 = vmul.f32 %v432, %v432
    %v483 = vmul.f32 %v433, %v433
    %v484 = vmul.f32 %v434, %v434
    %v485 = vmul.f32 %v435, %v435
    %v486 = vmul.f32 %v436, %v436
    %v487 = vmul.f32 %v437, %v437
    %v488 = vmul.f32 %v438, %v438
    %v489 = vmul.f32 %v439, %v439
    %v490 = vsub.f32 %v440, %v465
    %v491 = vsub.f32 %v441, %v466
    %v492 = vsub.f32 %v442, %v467
    %v493 = vsub.f32 %v443, %v468
    %v494 = vsub.f32 %v444, %v469
    %v495 = vsub.f32 %v445, %v470
    %v496 = vsub.f32 %v446, %v471
    %v497 = vsub.f32 %v447, %v472
    %v498 = vsub.f32 %v448, %v473
    %v499 = vsub.f32 %v449, %v474
    %v500 = vsub.f32 %v450, %v475
    %v501 = vsub.f32 %v451, %v476
    %v502 = vsub.f32 %v452, %v477
    %v503 = vsub.f32 %v453, %v478
    %v504 = vsub.f32 %v454, %v479
    %v505 = vsub.f32 %v455, %v480
    %v506 = vsub.f32 %v456, %v481
    %v507 = vsub.f32 %v457, %v482
    %v508 = vsub.f32 %v458, %v483
    %v509 = vsub.f32 %v459, %v484
    %v510 = vsub.f32 %v460, %v485
    %v511 = vsub.f32 %v461, %v486
    %v512 = vsub.f32 %v462, %v487
    %v513 = vsub.f32 %v463, %v488
    %v514 = vsub.f32 %v464, %v489
    %v515 = vadd.f32 %v490, 1e-05
    %v516 = vadd.f32 %v491, 1e-05
    %v517 = vadd.f32 %v492, 1e-05
    %v518 = vadd.f32 %v493, 1e-05
    %v519 = vadd.f32 %v494, 1e-05
    %v520 = vadd.f32 %v495, 1e-05
    %v521 = vadd.f32 %v496, 1e-05
    %v522 = vadd.f32 %v497, 1e-05
    %v523 = vadd.f32 %v498, 1e-05
    %v524 = vadd.f32 %v499, 1e-05
    %v525 = vadd.f32 %v500, 1e-05
    %v526 = vadd.f32 %v501, 1e-05
    %v527 = vadd.f32 %v502, 1e-05
    %v528 = vadd.f32 %v503, 1e-05
    %v529 = vadd.f32 %v504, 1e-05
    %v530 = vadd.f32 %v505, 1e-05
    %v531 = vadd.f32 %v506, 1e-05
    %v532 = vadd.f32 %v507, 1e-05
    %v533 = vadd.f32 %v508, 1e-05
    %v534 = vadd.f32 %v509, 1e-05
    %v535 = vadd.f32 %v510, 1e-05
    %v536 = vadd.f32 %v511, 1e-05
    %v537 = vadd.f32 %v512, 1e-05
    %v538 = vadd.f32 %v513, 1e-05
    %v539 = vadd.f32 %v514, 1e-05
    %v540 = vrsqrt.pop %v515
    %v541 = vmul.f32 %v540, %v515
    %v542 = vmul.f32 %v541, %v540
    %v543 = vmul.f32 0.5, %v542
    %v544 = vsub.f32 1.5, %v543
    %v545 = vmul.f32 %v540, %v544
    %vm546 = vweird.f32 %v515
    %vm547 = vweird.f32 %v540
    %vm548 = vmor %vm546, %vm547
    %v549 = vsel %vm548, %v540, %v545
    %v550 = vrsqrt.pop %v516
    %v551 = vmul.f32 %v550, %v516
    %v552 = vmul.f32 %v551, %v550
    %v553 = vmul.f32 0.5, %v552
    %v554 = vsub.f32 1.5, %v553
    %v555 = vmul.f32 %v550, %v554
    %vm556 = vweird.f32 %v516
    %vm557 = vweird.f32 %v550
    %vm558 = vmor %vm556, %vm557
    %v559 = vsel %vm558, %v550, %v555
    %v560 = vrsqrt.pop %v517
    %v561 = vmul.f32 %v560, %v517
    %v562 = vmul.f32 %v561, %v560
    %v563 = vmul.f32 0.5, %v562
    %v564 = vsub.f32 1.5, %v563
    %v565 = vmul.f32 %v560, %v564
    %vm566 = vweird.f32 %v517
    %vm567 = vweird.f32 %v560
    %vm568 = vmor %vm566, %vm567
    %v569 = vsel %vm568, %v560, %v565
    %v570 = vrsqrt.pop %v518
    %v571 = vmul.f32 %v570, %v518
    %v572 = vmul.f32 %v571, %v570
    %v573 = vmul.f32 0.5, %v572
    %v574 = vsub.f32 1.5, %v573
    %v575 = vmul.f32 %v570, %v574
    %vm576 = vweird.f32 %v518
    %vm577 = vweird.f32 %v570
    %vm578 = vmor %vm576, %vm577
    %v579 = vsel %vm578, %v570, %v575
    %v580 = vrsqrt.pop %v519
    %v581 = vmul.f32 %v580, %v519
    %v582 = vmul.f32 %v581, %v580
    %v583 = vmul.f32 0.5, %v582
    %v584 = vsub.f32 1.5, %v583
    %v585 = vmul.f32 %v580, %v584
    %vm586 = vweird.f32 %v519
    %vm587 = vweird.f32 %v580
    %vm588 = vmor %vm586, %vm587
    %v589 = vsel %vm588, %v580, %v585
    %v590 = vrsqrt.pop %v520
    %v591 = vmul.f32 %v590, %v520
    %v592 = vmul.f32 %v591, %v590
    %v593 = vmul.f32 0.5, %v592
    %v594 = vsub.f32 1.5, %v593
    %v595 = vmul.f32 %v590, %v594
    %vm596 = vweird.f32 %v520
    %vm597 = vweird.f32 %v590
    %vm598 = vmor %vm596, %vm597
    %v599 = vsel %vm598, %v590, %v595
    %v600 = vrsqrt.pop %v521
    %v601 = vmul.f32 %v600, %v521
    %v602 = vmul.f32 %v601, %v600
    %v603 = vmul.f32 0.5, %v602
    %v604 = vsub.f32 1.5, %v603
    %v605 = vmul.f32 %v600, %v604
    %vm606 = vweird.f32 %v521
    %vm607 = vweird.f32 %v600
    %vm608 = vmor %vm606, %vm607
    %v609 = vsel %vm608, %v600, %v605
    %v610 = vrsqrt.pop %v522
    %v611 = vmul.f32 %v610, %v522
    %v612 = vmul.f32 %v611, %v610
    %v613 = vmul.f32 0.5, %v612
    %v614 = vsub.f32 1.5, %v613
    %v615 = vmul.f32 %v610, %v614
    %vm616 = vweird.f32 %v522
    %vm617 = vweird.f32 %v610
    %vm618 = vmor %vm616, %vm617
    %v619 = vsel %vm618, %v610, %v615
    %v620 = vrsqrt.pop %v523
    %v621 = vmul.f32 %v620, %v523
    %v622 = vmul.f32 %v621, %v620
    %v623 = vmul.f32 0.5, %v622
    %v624 = vsub.f32 1.5, %v623
    %v625 = vmul.f32 %v620, %v624
    %vm626 = vweird.f32 %v523
    %vm627 = vweird.f32 %v620
    %vm628 = vmor %vm626, %vm627
    %v629 = vsel %vm628, %v620, %v625
    %v630 = vrsqrt.pop %v524
    %v631 = vmul.f32 %v630, %v524
    %v632 = vmul.f32 %v631, %v630
    %v633 = vmul.f32 0.5, %v632
    %v634 = vsub.f32 1.5, %v633
    %v635 = vmul.f32 %v630, %v634
    %vm636 = vweird.f32 %v524
    %vm637 = vweird.f32 %v630
    %vm638 = vmor %vm636, %vm637
    %v639 = vsel %vm638, %v630, %v635
    %v640 = vrsqrt.pop %v525
    %v641 = vmul.f32 %v640, %v525
    %v642 = vmul.f32 %v641, %v640
    %v643 = vmul.f32 0.5, %v642
    %v644 = vsub.f32 1.5, %v643
    %v645 = vmul.f32 %v640, %v644
    %vm646 = vweird.f32 %v525
    %vm647 = vweird.f32 %v640
    %vm648 = vmor %vm646, %vm647
    %v649 = vsel %vm648, %v640, %v645
    %v650 = vrsqrt.pop %v526
    %v651 = vmul.f32 %v650, %v526
    %v652 = vmul.f32 %v651, %v650
    %v653 = vmul.f32 0.5, %v652
    %v654 = vsub.f32 1.5, %v653
    %v655 = vmul.f32 %v650, %v654
    %vm656 = vweird.f32 %v526
    %vm657 = vweird.f32 %v650
    %vm658 = vmor %vm656, %vm657
    %v659 = vsel %vm658, %v650, %v655
    %v660 = vrsqrt.pop %v527
    %v661 = vmul.f32 %v660, %v527
    %v662 = vmul.f32 %v661, %v660
    %v663 = vmul.f32 0.5, %v662
    %v664 = vsub.f32 1.5, %v663
    %v665 = vmul.f32 %v660, %v664
    %vm666 = vweird.f32 %v527
    %vm667 = vweird.f32 %v660
    %vm668 = vmor %vm666, %vm667
    %v669 = vsel %vm668, %v660, %v665
    %v670 = vrsqrt.pop %v528
    %v671 = vmul.f32 %v670, %v528
    %v672 = vmul.f32 %v671, %v670
    %v673 = vmul.f32 0.5, %v672
    %v674 = vsub.f32 1.5, %v673
    %v675 = vmul.f32 %v670, %v674
    %vm676 = vweird.f32 %v528
    %vm677 = vweird.f32 %v670
    %vm678 = vmor %vm676, %vm677
    %v679 = vsel %vm678, %v670, %v675
    %v680 = vrsqrt.pop %v529
    %v681 = vmul.f32 %v680, %v529
    %v682 = vmul.f32 %v681, %v680
    %v683 = vmul.f32 0.5, %v682
    %v684 = vsub.f32 1.5, %v683
    %v685 = vmul.f32 %v680, %v684
    %vm686 = vweird.f32 %v529
    %vm687 = vweird.f32 %v680
    %vm688 = vmor %vm686, %vm687
    %v689 = vsel %vm688, %v680, %v685
    %v690 = vrsqrt.pop %v530
    %v691 = vmul.f32 %v690, %v530
    %v692 = vmul.f32 %v691, %v690
    %v693 = vmul.f32 0.5, %v692
    %v694 = vsub.f32 1.5, %v693
    %v695 = vmul.f32 %v690, %v694
    %vm696 = vweird.f32 %v530
    %vm697 = vweird.f32 %v690
    %vm698 = vmor %vm696, %vm697
    %v699 = vsel %vm698, %v690, %v695
    %v700 = vrsqrt.pop %v531
    %v701 = vmul.f32 %v700, %v531
    %v702 = vmul.f32 %v701, %v700
    %v703 = vmul.f32 0.5, %v702
    %v704 = vsub.f32 1.5, %v703
    %v705 = vmul.f32 %v700, %v704
    %vm706 = vweird.f32 %v531
    %vm707 = vweird.f32 %v700
    %vm708 = vmor %vm706, %vm707
    %v709 = vsel %vm708, %v700, %v705
    %v710 = vrsqrt.pop %v532
    %v711 = vmul.f32 %v710, %v532
    %v712 = vmul.f32 %v711, %v710
    %v713 = vmul.f32 0.5, %v712
    %v714 = vsub.f32 1.5, %v713
    %v715 = vmul.f32 %v710, %v714
    %vm716 = vweird.f32 %v532
    %vm717 = vweird.f32 %v710
    %vm718 = vmor %vm716, %vm717
    %v719 = vsel %vm718, %v710, %v715
    %v720 = vrsqrt.pop %v533
    %v721 = vmul.f32 %v720, %v533
    %v722 = vmul.f32 %v721, %v720
    %v723 = vmul.f32 0.5, %v722
    %v724 = vsub.f32 1.5, %v723
    %v725 = vmul.f32 %v720, %v724
    %vm726 = vweird.f32 %v533
    %vm727 = vweird.f32 %v720
    %vm728 = vmor %vm726, %vm727
    %v729 = vsel %vm728, %v720, %v725
    %v730 = vrsqrt.pop %v534
    %v731 = vmul.f32 %v730, %v534
    %v732 = vmul.f32 %v731, %v730
    %v733 = vmul.f32 0.5, %v732
    %v734 = vsub.f32 1.5, %v733
    %v735 = vmul.f32 %v730, %v734
    %vm736 = vweird.f32 %v534
    %vm737 = vweird.f32 %v730
    %vm738 = vmor %vm736, %vm737
    %v739 = vsel %vm738, %v730, %v735
    %v740 = vrsqrt.pop %v535
    %v741 = vmul.f32 %v740, %v535
    %v742 = vmul.f32 %v741, %v740
    %v743 = vmul.f32 0.5, %v742
    %v744 = vsub.f32 1.5, %v743
    %v745 = vmul.f32 %v740, %v744
    %vm746 = vweird.f32 %v535
    %vm747 = vweird.f32 %v740
    %vm748 = vmor %vm746, %vm747
    %v749 = vsel %vm748, %v740, %v745
    %v750 = vrsqrt.pop %v536
    %v751 = vmul.f32 %v750, %v536
    %v752 = vmul.f32 %v751, %v750
    %v753 = vmul.f32 0.5, %v752
    %v754 = vsub.f32 1.5, %v753
    %v755 = vmul.f32 %v750, %v754
    %vm756 = vweird.f32 %v536
    %vm757 = vweird.f32 %v750
    %vm758 = vmor %vm756, %vm757
    %v759 = vsel %vm758, %v750, %v755
    %v760 = vrsqrt.pop %v537
    %v761 = vmul.f32 %v760, %v537
    %v762 = vmul.f32 %v761, %v760
    %v763 = vmul.f32 0.5, %v762
    %v764 = vsub.f32 1.5, %v763
    %v765 = vmul.f32 %v760, %v764
    %vm766 = vweird.f32 %v537
    %vm767 = vweird.f32 %v760
    %vm768 = vmor %vm766, %vm767
    %v769 = vsel %vm768, %v760, %v765
    %v770 = vrsqrt.pop %v538
    %v771 = vmul.f32 %v770, %v538
    %v772 = vmul.f32 %v771, %v770
    %v773 = vmul.f32 0.5, %v772
    %v774 = vsub.f32 1.5, %v773
    %v775 = vmul.f32 %v770, %v774
    %vm776 = vweird.f32 %v538
    %vm777 = vweird.f32 %v770
    %vm778 = vmor %vm776, %vm777
    %v779 = vsel %vm778, %v770, %v775
    %v780 = vrsqrt.pop %v539
    %v781 = vmul.f32 %v780, %v539
    %v782 = vmul.f32 %v781, %v780
    %v783 = vmul.f32 0.5, %v782
    %v784 = vsub.f32 1.5, %v783
    %v785 = vmul.f32 %v780, %v784
    %vm786 = vweird.f32 %v539
    %vm787 = vweird.f32 %v780
    %vm788 = vmor %vm786, %vm787
    %v789 = vsel %vm788, %v780, %v785
    %v790 = vld [vmem:[#allocation5] sm:$0x7]
    %v791 = vld [vmem:[#allocation7] sm:$0x7]
    %v793 = vperm.slane %v790, 0
    %v794 = vperm.slane %v790, 1
    %v795 = vperm.slane %v790, 2
    %v799 = vmul.f32 %v549, %v793
    %v800 = vmul.f32 %v549, %v794
    %v801 = vmul.f32 %v549, %v795
    %v802 = vmul.f32 %v559, %v793
    %v803 = vmul.f32 %v559, %v794
    %v804 = vmul.f32 %v559, %v795
    %v805 = vmul.f32 %v569, %v793
    %v806 = vmul.f32 %v569, %v794
    %v807 = vmul.f32 %v569, %v795
    %v808 = vmul.f32 %v579, %v793
    %v809 = vmul.f32 %v579, %v794
    %v810 = vmul.f32 %v579, %v795
    %v811 = vmul.f32 %v589, %v793
    %v812 = vmul.f32 %v589, %v794
    %v813 = vmul.f32 %v589, %v795
    %v814 = vmul.f32 %v599, %v793
    %v815 = vmul.f32 %v599, %v794
    %v816 = vmul.f32 %v599, %v795
    %v817 = vmul.f32 %v609, %v793
    %v818 = vmul.f32 %v609, %v794
    %v819 = vmul.f32 %v609, %v795
    %v820 = vmul.f32 %v619, %v793
    %v821 = vmul.f32 %v619, %v794
    %v822 = vmul.f32 %v619, %v795
    %v823 = vmul.f32 %v629, %v793
    %v824 = vmul.f32 %v629, %v794
    %v825 = vmul.f32 %v629, %v795
    %v826 = vmul.f32 %v639, %v793
    %v827 = vmul.f32 %v639, %v794
    %v828 = vmul.f32 %v639, %v795
    %v829 = vmul.f32 %v649, %v793
    %v830 = vmul.f32 %v649, %v794
    %v831 = vmul.f32 %v649, %v795
    %v832 = vmul.f32 %v659, %v793
    %v833 = vmul.f32 %v659, %v794
    %v834 = vmul.f32 %v659, %v795
    %v835 = vmul.f32 %v669, %v793
    %v836 = vmul.f32 %v669, %v794
    %v837 = vmul.f32 %v669, %v795
    %v838 = vmul.f32 %v679, %v793
    %v839 = vmul.f32 %v679, %v794
    %v840 = vmul.f32 %v679, %v795
    %v841 = vmul.f32 %v689, %v793
    %v842 = vmul.f32 %v689, %v794
    %v843 = vmul.f32 %v689, %v795
    %v844 = vmul.f32 %v699, %v793
    %v845 = vmul.f32 %v699, %v794
    %v846 = vmul.f32 %v699, %v795
    %v847 = vmul.f32 %v709, %v793
    %v848 = vmul.f32 %v709, %v794
    %v849 = vmul.f32 %v709, %v795
    %v850 = vmul.f32 %v719, %v793
    %v851 = vmul.f32 %v719, %v794
    %v852 = vmul.f32 %v719, %v795
    %v853 = vmul.f32 %v729, %v793
    %v854 = vmul.f32 %v729, %v794
    %v855 = vmul.f32 %v729, %v795
    %v856 = vmul.f32 %v739, %v793
    %v857 = vmul.f32 %v739, %v794
    %v858 = vmul.f32 %v739, %v795
    %v859 = vmul.f32 %v749, %v793
    %v860 = vmul.f32 %v749, %v794
    %v861 = vmul.f32 %v749, %v795
    %v862 = vmul.f32 %v759, %v793
    %v863 = vmul.f32 %v759, %v794
    %v864 = vmul.f32 %v759, %v795
    %v865 = vmul.f32 %v769, %v793
    %v866 = vmul.f32 %v769, %v794
    %v867 = vmul.f32 %v769, %v795
    %v868 = vmul.f32 %v779, %v793
    %v869 = vmul.f32 %v779, %v794
    %v870 = vmul.f32 %v779, %v795
    %v871 = vmul.f32 %v789, %v793
    %v872 = vmul.f32 %v789, %v794
    %v873 = vmul.f32 %v789, %v795
    %v874 = vsub.f32 %v58, %v415
    %v875 = vsub.f32 %v59, %v415
    %v876 = vsub.f32 %v60, %v415
    %v877 = vsub.f32 %v61, %v416
    %v878 = vsub.f32 %v62, %v416
    %v879 = vsub.f32 %v63, %v416
    %v880 = vsub.f32 %v64, %v417
    %v881 = vsub.f32 %v65, %v417
    %v882 = vsub.f32 %v66, %v417
    %v883 = vsub.f32 %v67, %v418
    %v884 = vsub.f32 %v68, %v418
    %v885 = vsub.f32 %v69, %v418
    %v886 = vsub.f32 %v70, %v419
    %v887 = vsub.f32 %v71, %v419
    %v888 = vsub.f32 %v72, %v419
    %v889 = vsub.f32 %v73, %v420
    %v890 = vsub.f32 %v74, %v420
    %v891 = vsub.f32 %v75, %v420
    %v892 = vsub.f32 %v76, %v421
    %v893 = vsub.f32 %v77, %v421
    %v894 = vsub.f32 %v78, %v421
    %v895 = vsub.f32 %v79, %v422
    %v896 = vsub.f32 %v80, %v422
    %v897 = vsub.f32 %v81, %v422
    %v898 = vsub.f32 %v82, %v423
    %v899 = vsub.f32 %v83, %v423
    %v900 = vsub.f32 %v84, %v423
    %v901 = vsub.f32 %v85, %v424
    %v902 = vsub.f32 %v86, %v424
    %v903 = vsub.f32 %v87, %v424
    %v904 = vsub.f32 %v88, %v425
    %v905 = vsub.f32 %v89, %v425
    %v906 = vsub.f32 %v90, %v425
    %v907 = vsub.f32 %v91, %v426
    %v908 = vsub.f32 %v92, %v426
    %v909 = vsub.f32 %v93, %v426
    %v910 = vsub.f32 %v94, %v427
    %v911 = vsub.f32 %v95, %v427
    %v912 = vsub.f32 %v96, %v427
    %v913 = vsub.f32 %v97, %v428
    %v914 = vsub.f32 %v98, %v428
    %v915 = vsub.f32 %v99, %v428
    %v916 = vsub.f32 %v100, %v429
    %v917 = vsub.f32 %v101, %v429
    %v918 = vsub.f32 %v102, %v429
    %v919 = vsub.f32 %v103, %v430
    %v920 = vsub.f32 %v104, %v430
    %v921 = vsub.f32 %v105, %v430
    %v922 = vsub.f32 %v106, %v431
    %v923 = vsub.f32 %v107, %v431
    %v924 = vsub.f32 %v108, %v431
    %v925 = vsub.f32 %v109, %v432
    %v926 = vsub.f32 %v110, %v432
    %v927 = vsub.f32 %v111, %v432
    %v928 = vsub.f32 %v112, %v433
    %v929 = vsub.f32 %v113, %v433
    %v930 = vsub.f32 %v114, %v433
    %v931 = vsub.f32 %v115, %v434
    %v932 = vsub.f32 %v116, %v434
    %v933 = vsub.f32 %v117, %v434
    %v934 = vsub.f32 %v118, %v435
    %v935 = vsub.f32 %v119, %v435
    %v936 = vsub.f32 %v120, %v435
    %v937 = vsub.f32 %v121, %v436
    %v938 = vsub.f32 %v122, %v436
    %v939 = vsub.f32 %v123, %v436
    %v940 = vsub.f32 %v124, %v437
    %v941 = vsub.f32 %v125, %v437
    %v942 = vsub.f32 %v126, %v437
    %v943 = vsub.f32 %v127, %v438
    %v944 = vsub.f32 %v128, %v438
    %v945 = vsub.f32 %v129, %v438
    %v946 = vsub.f32 %v130, %v439
    %v947 = vsub.f32 %v131, %v439
    %v948 = vsub.f32 %v132, %v439
    %v949 = vmul.f32 %v874, %v799
    %v950 = vmul.f32 %v875, %v800
    %v951 = vmul.f32 %v876, %v801
    %v952 = vmul.f32 %v877, %v802
    %v953 = vmul.f32 %v878, %v803
    %v954 = vmul.f32 %v879, %v804
    %v955 = vmul.f32 %v880, %v805
    %v956 = vmul.f32 %v881, %v806
    %v957 = vmul.f32 %v882, %v807
    %v958 = vmul.f32 %v883, %v808
    %v959 = vmul.f32 %v884, %v809
    %v960 = vmul.f32 %v885, %v810
    %v961 = vmul.f32 %v886, %v811
    %v962 = vmul.f32 %v887, %v812
    %v963 = vmul.f32 %v888, %v813
    %v964 = vmul.f32 %v889, %v814
    %v965 = vmul.f32 %v890, %v815
    %v966 = vmul.f32 %v891, %v816
    %v967 = vmul.f32 %v892, %v817
    %v968 = vmul.f32 %v893, %v818
    %v969 = vmul.f32 %v894, %v819
    %v970 = vmul.f32 %v895, %v820
    %v971 = vmul.f32 %v896, %v821
    %v972 = vmul.f32 %v897, %v822
    %v973 = vmul.f32 %v898, %v823
    %v974 = vmul.f32 %v899, %v824
    %v975 = vmul.f32 %v900, %v825
    %v976 = vmul.f32 %v901, %v826
    %v977 = vmul.f32 %v902, %v827
    %v978 = vmul.f32 %v903, %v828
    %v979 = vmul.f32 %v904, %v829
    %v980 = vmul.f32 %v905, %v830
    %v981 = vmul.f32 %v906, %v831
    %v982 = vmul.f32 %v907, %v832
    %v983 = vmul.f32 %v908, %v833
    %v984 = vmul.f32 %v909, %v834
    %v985 = vmul.f32 %v910, %v835
    %v986 = vmul.f32 %v911, %v836
    %v987 = vmul.f32 %v912, %v837
    %v988 = vmul.f32 %v913, %v838
    %v989 = vmul.f32 %v914, %v839
    %v990 = vmul.f32 %v915, %v840
    %v991 = vmul.f32 %v916, %v841
    %v992 = vmul.f32 %v917, %v842
    %v993 = vmul.f32 %v918, %v843
    %v994 = vmul.f32 %v919, %v844
    %v995 = vmul.f32 %v920, %v845
    %v996 = vmul.f32 %v921, %v846
    %v997 = vmul.f32 %v922, %v847
    %v998 = vmul.f32 %v923, %v848
    %v999 = vmul.f32 %v924, %v849
    %v1000 = vmul.f32 %v925, %v850
    %v1001 = vmul.f32 %v926, %v851
    %v1002 = vmul.f32 %v927, %v852
    %v1003 = vmul.f32 %v928, %v853
    %v1004 = vmul.f32 %v929, %v854
    %v1005 = vmul.f32 %v930, %v855
    %v1006 = vmul.f32 %v931, %v856
    %v1007 = vmul.f32 %v932, %v857
    %v1008 = vmul.f32 %v933, %v858
    %v1009 = vmul.f32 %v934, %v859
    %v1010 = vmul.f32 %v935, %v860
    %v1011 = vmul.f32 %v936, %v861
    %v1012 = vmul.f32 %v937, %v862
    %v1013 = vmul.f32 %v938, %v863
    %v1014 = vmul.f32 %v939, %v864
    %v1015 = vmul.f32 %v940, %v865
    %v1016 = vmul.f32 %v941, %v866
    %v1017 = vmul.f32 %v942, %v867
    %v1018 = vmul.f32 %v943, %v868
    %v1019 = vmul.f32 %v944, %v869
    %v1020 = vmul.f32 %v945, %v870
    %v1021 = vmul.f32 %v946, %v871
    %v1022 = vmul.f32 %v947, %v872
    %v1023 = vmul.f32 %v948, %v873
    %v1025 = vperm.slane %v791, 0
    %v1026 = vperm.slane %v791, 1
    %v1027 = vperm.slane %v791, 2
    %v1031 = vadd.f32 %v949, %v1025
    %v1032 = vadd.f32 %v950, %v1026
    %v1033 = vadd.f32 %v951, %v1027
    %v1034 = vadd.f32 %v952, %v1025
    %v1035 = vadd.f32 %v953, %v1026
    %v1036 = vadd.f32 %v954, %v1027
    %v1037 = vadd.f32 %v955, %v1025
    %v1038 = vadd.f32 %v956, %v1026
    %v1039 = vadd.f32 %v957, %v1027
    %v1040 = vadd.f32 %v958, %v1025
    %v1041 = vadd.f32 %v959, %v1026
    %v1042 = vadd.f32 %v960, %v1027
    %v1043 = vadd.f32 %v961, %v1025
    %v1044 = vadd.f32 %v962, %v1026
    %v1045 = vadd.f32 %v963, %v1027
    %v1046 = vadd.f32 %v964, %v1025
    %v1047 = vadd.f32 %v965, %v1026
    %v1048 = vadd.f32 %v966, %v1027
    %v1049 = vadd.f32 %v967, %v1025
    %v1050 = vadd.f32 %v968, %v1026
    %v1051 = vadd.f32 %v969, %v1027
    %v1052 = vadd.f32 %v970, %v1025
    %v1053 = vadd.f32 %v971, %v1026
    %v1054 = vadd.f32 %v972, %v1027
    %v1055 = vadd.f32 %v973, %v1025
    %v1056 = vadd.f32 %v974, %v1026
    %v1057 = vadd.f32 %v975, %v1027
    %v1058 = vadd.f32 %v976, %v1025
    %v1059 = vadd.f32 %v977, %v1026
    %v1060 = vadd.f32 %v978, %v1027
    %v1061 = vadd.f32 %v979, %v1025
    %v1062 = vadd.f32 %v980, %v1026
    %v1063 = vadd.f32 %v981, %v1027
    %v1064 = vadd.f32 %v982, %v1025
    %v1065 = vadd.f32 %v983, %v1026
    %v1066 = vadd.f32 %v984, %v1027
    %v1067 = vadd.f32 %v985, %v1025
    %v1068 = vadd.f32 %v986, %v1026
    %v1069 = vadd.f32 %v987, %v1027
    %v1070 = vadd.f32 %v988, %v1025
    %v1071 = vadd.f32 %v989, %v1026
    %v1072 = vadd.f32 %v990, %v1027
    %v1073 = vadd.f32 %v991, %v1025
    %v1074 = vadd.f32 %v992, %v1026
    %v1075 = vadd.f32 %v993, %v1027
    %v1076 = vadd.f32 %v994, %v1025
    %v1077 = vadd.f32 %v995, %v1026
    %v1078 = vadd.f32 %v996, %v1027
    %v1079 = vadd.f32 %v997, %v1025
    %v1080 = vadd.f32 %v998, %v1026
    %v1081 = vadd.f32 %v999, %v1027
    %v1082 = vadd.f32 %v1000, %v1025
    %v1083 = vadd.f32 %v1001, %v1026
    %v1084 = vadd.f32 %v1002, %v1027
    %v1085 = vadd.f32 %v1003, %v1025
    %v1086 = vadd.f32 %v1004, %v1026
    %v1087 = vadd.f32 %v1005, %v1027
    %v1088 = vadd.f32 %v1006, %v1025
    %v1089 = vadd.f32 %v1007, %v1026
    %v1090 = vadd.f32 %v1008, %v1027
    %v1091 = vadd.f32 %v1009, %v1025
    %v1092 = vadd.f32 %v1010, %v1026
    %v1093 = vadd.f32 %v1011, %v1027
    %v1094 = vadd.f32 %v1012, %v1025
    %v1095 = vadd.f32 %v1013, %v1026
    %v1096 = vadd.f32 %v1014, %v1027
    %v1097 = vadd.f32 %v1015, %v1025
    %v1098 = vadd.f32 %v1016, %v1026
    %v1099 = vadd.f32 %v1017, %v1027
    %v1100 = vadd.f32 %v1018, %v1025
    %v1101 = vadd.f32 %v1019, %v1026
    %v1102 = vadd.f32 %v1020, %v1027
    %v1103 = vadd.f32 %v1021, %v1025
    %v1104 = vadd.f32 %v1022, %v1026
    %v1105 = vadd.f32 %v1023, %v1027
    %1106 = vst [vmem:[#allocation8] sm:$0xff] %v1031
    %1107 = vst [vmem:[#allocation8 + $0x8] sm:$0xff] %v1032
    %1108 = vst [vmem:[#allocation8 + $0x10] sm:$0xff] %v1033
    %1109 = vst [vmem:[#allocation8 + $0x18] sm:$0xff] %v1034
    %1110 = vst [vmem:[#allocation8 + $0x20] sm:$0xff] %v1035
    %1111 = vst [vmem:[#allocation8 + $0x28] sm:$0xff] %v1036
    %1112 = vst [vmem:[#allocation8 + $0x30] sm:$0xff] %v1037
    %1113 = vst [vmem:[#allocation8 + $0x38] sm:$0xff] %v1038
    %1114 = vst [vmem:[#allocation8 + $0x40] sm:$0xff] %v1039
    %1115 = vst [vmem:[#allocation8 + $0x48] sm:$0xff] %v1040
    %1116 = vst [vmem:[#allocation8 + $0x50] sm:$0xff] %v1041
    %1117 = vst [vmem:[#allocation8 + $0x58] sm:$0xff] %v1042
    %1118 = vst [vmem:[#allocation8 + $0x60] sm:$0xff] %v1043
    %1119 = vst [vmem:[#allocation8 + $0x68] sm:$0xff] %v1044
    %1120 = vst [vmem:[#allocation8 + $0x70] sm:$0xff] %v1045
    %1121 = vst [vmem:[#allocation8 + $0x78] sm:$0xff] %v1046
    %1122 = vst [vmem:[#allocation8 + $0x80] sm:$0xff] %v1047
    %1123 = vst [vmem:[#allocation8 + $0x88] sm:$0xff] %v1048
    %1124 = vst [vmem:[#allocation8 + $0x90] sm:$0xff] %v1049
    %1125 = vst [vmem:[#allocation8 + $0x98] sm:$0xff] %v1050
    %1126 = vst [vmem:[#allocation8 + $0xa0] sm:$0xff] %v1051
    %1127 = vst [vmem:[#allocation8 + $0xa8] sm:$0xff] %v1052
    %1128 = vst [vmem:[#allocation8 + $0xb0] sm:$0xff] %v1053
    %1129 = vst [vmem:[#allocation8 + $0xb8] sm:$0xff] %v1054
    %1130 = vst [vmem:[#allocation8 + $0xc0] sm:$0xff] %v1055
    %1131 = vst [vmem:[#allocation8 + $0xc8] sm:$0xff] %v1056
    %1132 = vst [vmem:[#allocation8 + $0xd0] sm:$0xff] %v1057
    %1133 = vst [vmem:[#allocation8 + $0xd8] sm:$0xff] %v1058
    %1134 = vst [vmem:[#allocation8 + $0xe0] sm:$0xff] %v1059
    %1135 = vst [vmem:[#allocation8 + $0xe8] sm:$0xff] %v1060
    %1136 = vst [vmem:[#allocation8 + $0xf0] sm:$0xff] %v1061
    %1137 = vst [vmem:[#allocation8 + $0xf8] sm:$0xff] %v1062
    %1138 = vst [vmem:[#allocation8 + $0x100] sm:$0xff] %v1063
    %1139 = vst [vmem:[#allocation8 + $0x108] sm:$0xff] %v1064
    %1140 = vst [vmem:[#allocation8 + $0x110] sm:$0xff] %v1065
    %1141 = vst [vmem:[#allocation8 + $0x118] sm:$0xff] %v1066
    %1142 = vst [vmem:[#allocation8 + $0x120] sm:$0xff] %v1067
    %1143 = vst [vmem:[#allocation8 + $0x128] sm:$0xff] %v1068
    %1144 = vst [vmem:[#allocation8 + $0x130] sm:$0xff] %v1069
    %1145 = vst [vmem:[#allocation8 + $0x138] sm:$0xff] %v1070
    %1146 = vst [vmem:[#allocation8 + $0x140] sm:$0xff] %v1071
    %1147 = vst [vmem:[#allocation8 + $0x148] sm:$0xff] %v1072
    %1148 = vst [vmem:[#allocation8 + $0x150] sm:$0xff] %v1073
    %1149 = vst [vmem:[#allocation8 + $0x158] sm:$0xff] %v1074
    %1150 = vst [vmem:[#allocation8 + $0x160] sm:$0xff] %v1075
    %1151 = vst [vmem:[#allocation8 + $0x168] sm:$0xff] %v1076
    %1152 = vst [vmem:[#allocation8 + $0x170] sm:$0xff] %v1077
    %1153 = vst [vmem:[#allocation8 + $0x178] sm:$0xff] %v1078
    %1154 = vst [vmem:[#allocation8 + $0x180] sm:$0xff] %v1079
    %1155 = vst [vmem:[#allocation8 + $0x188] sm:$0xff] %v1080
    %1156 = vst [vmem:[#allocation8 + $0x190] sm:$0xff] %v1081
    %1157 = vst [vmem:[#allocation8 + $0x198] sm:$0xff] %v1082
    %1158 = vst [vmem:[#allocation8 + $0x1a0] sm:$0xff] %v1083
    %1159 = vst [vmem:[#allocation8 + $0x1a8] sm:$0xff] %v1084
    %1160 = vst [vmem:[#allocation8 + $0x1b0] sm:$0xff] %v1085
    %1161 = vst [vmem:[#allocation8 + $0x1b8] sm:$0xff] %v1086
    %1162 = vst [vmem:[#allocation8 + $0x1c0] sm:$0xff] %v1087
    %1163 = vst [vmem:[#allocation8 + $0x1c8] sm:$0xff] %v1088
    %1164 = vst [vmem:[#allocation8 + $0x1d0] sm:$0xff] %v1089
    %1165 = vst [vmem:[#allocation8 + $0x1d8] sm:$0xff] %v1090
    %1166 = vst [vmem:[#allocation8 + $0x1e0] sm:$0xff] %v1091
    %1167 = vst [vmem:[#allocation8 + $0x1e8] sm:$0xff] %v1092
    %1168 = vst [vmem:[#allocation8 + $0x1f0] sm:$0xff] %v1093
    %1169 = vst [vmem:[#allocation8 + $0x1f8] sm:$0xff] %v1094
    %1170 = vst [vmem:[#allocation8 + $0x200] sm:$0xff] %v1095
    %1171 = vst [vmem:[#allocation8 + $0x208] sm:$0xff] %v1096
    %1172 = vst [vmem:[#allocation8 + $0x210] sm:$0xff] %v1097
    %1173 = vst [vmem:[#allocation8 + $0x218] sm:$0xff] %v1098
    %1174 = vst [vmem:[#allocation8 + $0x220] sm:$0xff] %v1099
    %1175 = vst [vmem:[#allocation8 + $0x228] sm:$0xff] %v1100
    %1176 = vst [vmem:[#allocation8 + $0x230] sm:$0xff] %v1101
    %1177 = vst [vmem:[#allocation8 + $0x238] sm:$0xff] %v1102
    %1178 = vst [vmem:[#allocation8 + $0x240] sm:$0xf] %v1103
    %1179 = vst [vmem:[#allocation8 + $0x248] sm:$0xf] %v1104
    %1180 = vst [vmem:[#allocation8 + $0x250] sm:$0xf] %v1105
    // Predicated region
    $region26: #{tpu_custom_call.1} parent=1 // pred_check
      _
    $region27: #{tpu_custom_call.1} parent=1 // pred_check_branch
      %1182 = sbr.rel (0) target = $region29
    $region28: #{tpu_custom_call.1} parent=1 // pred_region
      %1184 = vsyncadd [#allocation4], 0
      %s1185 = sshll.u32 [#allocation8], 4
      %s1186 = int_to_ptr.vmem [resolvable:$true] %s1185
      %s1187 = sshll.u32 %s3, 4
      %s1188 = int_to_ptr.hbm [resolvable:$true] %s1187
      %1193 = dma.vmem_to_hbm [thread:$0]  %s1186, 9600, %s1188, [#allocation4], 384, 384, 24
    $region29: #{tpu_custom_call.1} parent=1 // pred_fallthru
      _
    // Predicated region
    $region30: #{tpu_custom_call.1} parent=1 // pred_check
      _
    $region31: #{tpu_custom_call.1} parent=1 // pred_check_branch
      %1195 = sbr.rel (0) target = $region33
    $region32: #{tpu_custom_call.1} parent=1 // pred_region
      %1197 = dma.done [#allocation4], 9600
    $region33: #{tpu_custom_call.1} parent=1 // pred_fallthru
      _
    %1198 = vsyncpa [#allocation3], 1
    %1199 = vsyncpa [#allocation6], 1
    %1200 = vsyncpa [#allocation4], 1

</llo_original>
